<compile_context>
chip_gen: v7x
topology: tpu7x:2x2x1
jax: 0.10.0
libtpu: 0.0.40
codegen_flags: <defaults>
</compile_context>

<pallas_src>
import functools
import math

import jax
import jax.numpy as jnp
from jax.experimental import pallas as pl
from jax.experimental.pallas import tpu as pltpu


def _rmsnorm_kernel(*refs, eps, n_seg, seg_len, has_weight):
    """RMSNorm over each logical row of length `seg_len`.

    When n_seg > 1 each physical row packs n_seg logical rows (lane-dense
    layout for seg_len % 128 != 0); per-segment statistics are computed with
    masked reductions.

    NOTE: rows past the array edge in a partial last tile hold unspecified
    data.  Nothing here reduces across rows, so those rows only produce
    garbage that the masked output writeback never stores.
    """
    if has_weight:
        x_ref, w_ref, o_ref = refs
    else:
        x_ref, o_ref = refs
        w_ref = None

    x = x_ref[...].astype(jnp.float32)   # f32 statistics regardless of input dtype
    sq = x * x

    if n_seg == 1:
        inv = jax.lax.rsqrt(jnp.mean(sq, axis=-1, keepdims=True) + eps)
        y = x * inv
    else:
        width = n_seg * seg_len
        lane = jax.lax.broadcasted_iota(jnp.int32, (1, width), 1)
        scale = jnp.float32(1.0 / seg_len)
        inv_full = jnp.zeros(sq.shape, jnp.float32)
        for s in range(n_seg):                       # n_seg is small & static
            m = (lane >= s * seg_len) & (lane < (s + 1) * seg_len)   # (1, width)
            ss = jnp.sum(jnp.where(m, sq, 0.0), axis=-1, keepdims=True)
            inv_s = jax.lax.rsqrt(ss * scale + eps)                  # (tile, 1)
            inv_full = inv_full + jnp.where(m, inv_s, 0.0)
        y = x * inv_full

    if has_weight:
        y = y * w_ref[...]                           # w already f32, (1, width)
    o_ref[...] = y.astype(o_ref.dtype)


def _vmem_capacity_bytes():
    try:
        info = pltpu.get_tpu_info()
        cap = getattr(info, "vmem_capacity_bytes", None)
        if cap:
            return int(cap)
    except Exception:
        pass
    return 64 * 1024 * 1024   # conservative fallback (v7x-sized)


def _chip_vmem_policy():
    """Returns (tile VMEM budget, scoped-limit cap, limit margin, input-byte target)."""
    cap = _vmem_capacity_bytes()
    if cap >= 96 * 1024 * 1024:
        # v5e / v6e: 128 MiB physical VMEM -> big tiles, generous scoped limit.
        return (64 * 1024 * 1024, 100 * 1024 * 1024, 1.5, 8 * 1024 * 1024)
    # v7x: 64 MiB physical VMEM -> keep the scoped limit <= ~40 MiB so Mosaic
    # internal scratch and the resident weight always fit.
    return (26 * 1024 * 1024, 40 * 1024 * 1024, 1.3, 4 * 1024 * 1024)


def _pick_tile_rows(rows, width, itemsize, vmem_budget_bytes, target_input_bytes):
    """Largest row tile that (a) moves ~target_input_bytes of input per grid
    step (amortizes the ~0.35us/step pipeline overhead) and (b) fits the
    per-chip VMEM budget (double-buffered in/out tiles + f32 intermediates)."""
    io_bytes_per_row = width * itemsize
    vmem_bytes_per_row = width * (4 * itemsize + 2 * 4)
    target = max(8, target_input_bytes // max(io_bytes_per_row, 1))
    cap = max(8, vmem_budget_bytes // max(vmem_bytes_per_row, 1))
    tile = min(target, cap)
    if rows <= tile:
        return max(rows, 1)          # one full-extent block (legal even if not %8)
    return max(8, (tile // 8) * 8)


def _balance_grid(rows, tile_rows):
    """Prefer an even (>= 2) number of grid steps so v7x's two TensorCores get
    equal work under dimension_semantics=('parallel',).  Costs at most one
    extra ~0.35us grid step on single-TC chips."""
    if rows < 16:
        return tile_rows
    steps = pl.cdiv(rows, tile_rows)
    if steps % 2 == 0:
        return tile_rows
    want = steps + 1
    new_tile = max(8, ((pl.cdiv(rows, want)) + 7) // 8 * 8)
    if pl.cdiv(rows, new_tile) % 2 == 0:
        return new_tile
    return tile_rows


def triton_rmsnorm(x, weight, eps=1e-5, tile_rows=None):
    """RMSNorm forward. x: (..., H); weight: (H,) or None."""
    orig_shape = x.shape
    orig_dtype = x.dtype
    H = orig_shape[-1]
    x2d = x.reshape(-1, H)
    rows = x2d.shape[0]
    itemsize = jnp.dtype(orig_dtype).itemsize

    # Lane-density guard: pack k logical rows per physical row when H is not a
    # multiple of 128 and the row count allows it (free row-major reshape).
    pack = 1
    if H > 0 and H % 128 != 0:
        k = 128 // math.gcd(H, 128)
        if k <= 16 and rows >= k and rows % k == 0:
            pack = k
    width = pack * H
    if pack > 1:
        rows = rows // pack
        x2d = x2d.reshape(rows, width)

    budget, limit_cap, margin, target_bytes = _chip_vmem_policy()
    if tile_rows is None:
        tile_rows = _pick_tile_rows(rows, width, itemsize, budget, target_bytes)
        tile_rows = _balance_grid(rows, tile_rows)
    tile_rows = min(tile_rows, max(rows, 1))

    grid = (pl.cdiv(rows, tile_rows),)

    has_weight = weight is not None
    args = [x2d]
    in_specs = [pl.BlockSpec((tile_rows, width), lambda i: (i, 0))]
    if has_weight:
        w_row = weight.astype(jnp.float32).reshape(-1)   # pre-cast once, host side
        if pack > 1:
            w_row = jnp.tile(w_row, (pack,))
        args.append(w_row.reshape(1, width))
        in_specs.append(pl.BlockSpec((1, width), lambda i: (0, 0)))  # resident weight

    # VMEM estimate: double-buffered in + out tiles, f32 intermediates (upper
    # bound), resident f32 weight.
    est_vmem = (4 * tile_rows * width * itemsize
                + 2 * tile_rows * width * 4
                + 2 * width * 4)
    vmem_limit = min(limit_cap, max(int(margin * est_vmem), 16 * 1024 * 1024))

    cost = pl.CostEstimate(
        flops=4 * rows * width,
        transcendentals=rows * pack,
        bytes_accessed=2 * rows * width * itemsize + width * 4,
    )

    kernel = functools.partial(_rmsnorm_kernel, eps=eps, n_seg=pack,
                               seg_len=H, has_weight=has_weight)

    out = pl.pallas_call(
        kernel,
        out_shape=jax.ShapeDtypeStruct((rows, width), orig_dtype),
        grid_spec=pltpu.PrefetchScalarGridSpec(
            num_scalar_prefetch=0,
            grid=grid,
            in_specs=in_specs,
            out_specs=pl.BlockSpec((tile_rows, width), lambda i: (i, 0)),
        ),
        compiler_params=pltpu.CompilerParams(
            dimension_semantics=("parallel",),   # rows independent -> megacore shard
            vmem_limit_bytes=vmem_limit,
        ),
        cost_estimate=cost,
    )(*args)

    return out.reshape(orig_shape)


def rmsnorm_reference(x, weight, eps=1e-5):
    x32 = x.astype(jnp.float32)
    inv = jax.lax.rsqrt(jnp.mean(x32 * x32, axis=-1, keepdims=True) + eps)
    out = x32 * inv
    if weight is not None:
        out = out * weight.astype(jnp.float32)
    return out.astype(x.dtype)


if __name__ == "__main__":
    key = jax.random.PRNGKey(0)
    batch, seq, hidden = 2, 8, 32
    x = jax.random.normal(key, (batch, seq, hidden), dtype=jnp.float32)
    # Parameter init matches torch.nn.Parameter(torch.ones(normalized_shape)).
    weight = jnp.ones((hidden,), dtype=jnp.float32)

    # Case 1: f32, H=32 -> lane-packed path (4 rows per physical row).
    out = jax.block_until_ready(triton_rmsnorm(x, weight, eps=1e-5))
    ref = rmsnorm_reference(x, weight, eps=1e-5)
    assert out.shape == x.shape and out.dtype == x.dtype
    assert jnp.allclose(out, ref, atol=1e-5, rtol=1e-5), "mismatch vs reference"

    # Case 2: bf16, row count not a multiple of the pack factor -> plain path
    # with a partial last tile (masked writeback), f32 statistics in-kernel.
    xb = jax.random.normal(jax.random.PRNGKey(1), (3, 7, hidden),
                           dtype=jnp.bfloat16)
    wb = jnp.ones((hidden,), dtype=jnp.float32)
    outb = jax.block_until_ready(triton_rmsnorm(xb, wb, eps=1e-5, tile_rows=8))
    refb = rmsnorm_reference(xb, wb, eps=1e-5)
    assert outb.dtype == xb.dtype
    assert jnp.allclose(outb.astype(jnp.float32), refb.astype(jnp.float32),
                        atol=2e-2, rtol=2e-2), "bf16 mismatch vs reference"

    # Case 3: H % 128 == 0 hot path with auto tile sizing and even-grid
    # balancing (grid of 2 parallel steps).
    xc = jax.random.normal(jax.random.PRNGKey(2), (4, 8, 128), dtype=jnp.float32)
    wc = jnp.ones((128,), dtype=jnp.float32)
    outc = jax.block_until_ready(triton_rmsnorm(xc, wc, eps=1e-5))
    refc = rmsnorm_reference(xc, wc, eps=1e-5)
    assert jnp.allclose(outc, refc, atol=1e-5, rtol=1e-5), "H=128 mismatch"

    print("KERNEL_OK")
</pallas_src>

<mosaic_0001>
module attributes {stable_mosaic.version = 11 : i64} {
  func.func @_rmsnorm_kernel(%arg0: i32, %arg1: memref<4x128xf32, #tpu.memory_space<vmem>>, %arg2: memref<1x128xf32, #tpu.memory_space<vmem>>, %arg3: memref<4x128xf32, #tpu.memory_space<vmem>>) attributes {dimension_semantics = [#tpu.dimension_semantics<parallel>], iteration_bounds = array<i64: 1>, scalar_prefetch = 0 : i64, scratch_operands = 0 : i64, tpu.core_type = #tpu.core_type<tc>, window_params = [{transform_indices = @transform_0, window_bounds = array<i64: 4, 128>}, {pipeline_mode = #tpu.pipeline_mode<synchronous>, transform_indices = @transform_1, window_bounds = array<i64: 1, 128>}, {transform_indices = @transform_2, window_bounds = array<i64: 4, 128>}]} {
    %c0 = arith.constant 0 : index
    %c0_0 = arith.constant 0 : index
    %0 = vector.load %arg1[%c0, %c0_0] : memref<4x128xf32, #tpu.memory_space<vmem>>, vector<4x128xf32>
    %1 = arith.mulf %0, %0 : vector<4x128xf32>
    %2 = tpu.iota {dimensions = array<i32: 1>} : vector<1x128xi32>
    %cst = arith.constant 0.000000e+00 : f32
    %3 = vector.broadcast %cst : f32 to vector<4x128xf32>
    %c0_i32 = arith.constant 0 : i32
    %4 = vector.broadcast %c0_i32 : i32 to vector<1x128xi32>
    %5 = arith.cmpi sge, %2, %4 : vector<1x128xi32>
    %c32_i32 = arith.constant 32 : i32
    %6 = vector.broadcast %c32_i32 : i32 to vector<1x128xi32>
    %7 = arith.cmpi slt, %2, %6 : vector<1x128xi32>
    %8 = arith.andi %5, %7 : vector<1x128xi1>
    %cst_1 = arith.constant 0.000000e+00 : f32
    %9 = vector.shape_cast %8 : vector<1x128xi1> to vector<1x128xi1>
    %10 = vector.broadcast %9 : vector<1x128xi1> to vector<4x128xi1>
    %11 = vector.broadcast %cst_1 : f32 to vector<4x128xf32>
    %12 = arith.select %10, %1, %11 : vector<4x128xi1>, vector<4x128xf32>
    %cst_2 = arith.constant dense<0.000000e+00> : vector<4xf32>
    %13 = vector.multi_reduction <add>, %12, %cst_2 [1] : vector<4x128xf32> to vector<4xf32>
    %14 = vector.shape_cast %13 : vector<4xf32> to vector<4x1xf32>
    %cst_3 = arith.constant 3.125000e-02 : f32
    %15 = vector.broadcast %cst_3 : f32 to vector<4x1xf32>
    %16 = arith.mulf %14, %15 : vector<4x1xf32>
    %cst_4 = arith.constant 9.99999974E-6 : f32
    %17 = vector.broadcast %cst_4 : f32 to vector<4x1xf32>
    %18 = arith.addf %16, %17 : vector<4x1xf32>
    %19 = math.rsqrt %18 : vector<4x1xf32>
    %cst_5 = arith.constant 0.000000e+00 : f32
    %20 = vector.shape_cast %8 : vector<1x128xi1> to vector<1x128xi1>
    %21 = vector.broadcast %20 : vector<1x128xi1> to vector<4x128xi1>
    %22 = vector.shape_cast %19 : vector<4x1xf32> to vector<4x1xf32>
    %23 = vector.broadcast %22 : vector<4x1xf32> to vector<4x128xf32>
    %24 = vector.broadcast %cst_5 : f32 to vector<4x128xf32>
    %25 = arith.select %21, %23, %24 : vector<4x128xi1>, vector<4x128xf32>
    %26 = arith.addf %3, %25 : vector<4x128xf32>
    %c32_i32_6 = arith.constant 32 : i32
    %27 = vector.broadcast %c32_i32_6 : i32 to vector<1x128xi32>
    %28 = arith.cmpi sge, %2, %27 : vector<1x128xi32>
    %c64_i32 = arith.constant 64 : i32
    %29 = vector.broadcast %c64_i32 : i32 to vector<1x128xi32>
    %30 = arith.cmpi slt, %2, %29 : vector<1x128xi32>
    %31 = arith.andi %28, %30 : vector<1x128xi1>
    %cst_7 = arith.constant 0.000000e+00 : f32
    %32 = vector.shape_cast %31 : vector<1x128xi1> to vector<1x128xi1>
    %33 = vector.broadcast %32 : vector<1x128xi1> to vector<4x128xi1>
    %34 = vector.broadcast %cst_7 : f32 to vector<4x128xf32>
    %35 = arith.select %33, %1, %34 : vector<4x128xi1>, vector<4x128xf32>
    %cst_8 = arith.constant dense<0.000000e+00> : vector<4xf32>
    %36 = vector.multi_reduction <add>, %35, %cst_8 [1] : vector<4x128xf32> to vector<4xf32>
    %37 = vector.shape_cast %36 : vector<4xf32> to vector<4x1xf32>
    %cst_9 = arith.constant 3.125000e-02 : f32
    %38 = vector.broadcast %cst_9 : f32 to vector<4x1xf32>
    %39 = arith.mulf %37, %38 : vector<4x1xf32>
    %cst_10 = arith.constant 9.99999974E-6 : f32
    %40 = vector.broadcast %cst_10 : f32 to vector<4x1xf32>
    %41 = arith.addf %39, %40 : vector<4x1xf32>
    %42 = math.rsqrt %41 : vector<4x1xf32>
    %cst_11 = arith.constant 0.000000e+00 : f32
    %43 = vector.shape_cast %31 : vector<1x128xi1> to vector<1x128xi1>
    %44 = vector.broadcast %43 : vector<1x128xi1> to vector<4x128xi1>
    %45 = vector.shape_cast %42 : vector<4x1xf32> to vector<4x1xf32>
    %46 = vector.broadcast %45 : vector<4x1xf32> to vector<4x128xf32>
    %47 = vector.broadcast %cst_11 : f32 to vector<4x128xf32>
    %48 = arith.select %44, %46, %47 : vector<4x128xi1>, vector<4x128xf32>
    %49 = arith.addf %26, %48 : vector<4x128xf32>
    %c64_i32_12 = arith.constant 64 : i32
    %50 = vector.broadcast %c64_i32_12 : i32 to vector<1x128xi32>
    %51 = arith.cmpi sge, %2, %50 : vector<1x128xi32>
    %c96_i32 = arith.constant 96 : i32
    %52 = vector.broadcast %c96_i32 : i32 to vector<1x128xi32>
    %53 = arith.cmpi slt, %2, %52 : vector<1x128xi32>
    %54 = arith.andi %51, %53 : vector<1x128xi1>
    %cst_13 = arith.constant 0.000000e+00 : f32
    %55 = vector.shape_cast %54 : vector<1x128xi1> to vector<1x128xi1>
    %56 = vector.broadcast %55 : vector<1x128xi1> to vector<4x128xi1>
    %57 = vector.broadcast %cst_13 : f32 to vector<4x128xf32>
    %58 = arith.select %56, %1, %57 : vector<4x128xi1>, vector<4x128xf32>
    %cst_14 = arith.constant dense<0.000000e+00> : vector<4xf32>
    %59 = vector.multi_reduction <add>, %58, %cst_14 [1] : vector<4x128xf32> to vector<4xf32>
    %60 = vector.shape_cast %59 : vector<4xf32> to vector<4x1xf32>
    %cst_15 = arith.constant 3.125000e-02 : f32
    %61 = vector.broadcast %cst_15 : f32 to vector<4x1xf32>
    %62 = arith.mulf %60, %61 : vector<4x1xf32>
    %cst_16 = arith.constant 9.99999974E-6 : f32
    %63 = vector.broadcast %cst_16 : f32 to vector<4x1xf32>
    %64 = arith.addf %62, %63 : vector<4x1xf32>
    %65 = math.rsqrt %64 : vector<4x1xf32>
    %cst_17 = arith.constant 0.000000e+00 : f32
    %66 = vector.shape_cast %54 : vector<1x128xi1> to vector<1x128xi1>
    %67 = vector.broadcast %66 : vector<1x128xi1> to vector<4x128xi1>
    %68 = vector.shape_cast %65 : vector<4x1xf32> to vector<4x1xf32>
    %69 = vector.broadcast %68 : vector<4x1xf32> to vector<4x128xf32>
    %70 = vector.broadcast %cst_17 : f32 to vector<4x128xf32>
    %71 = arith.select %67, %69, %70 : vector<4x128xi1>, vector<4x128xf32>
    %72 = arith.addf %49, %71 : vector<4x128xf32>
    %c96_i32_18 = arith.constant 96 : i32
    %73 = vector.broadcast %c96_i32_18 : i32 to vector<1x128xi32>
    %74 = arith.cmpi sge, %2, %73 : vector<1x128xi32>
    %c128_i32 = arith.constant 128 : i32
    %75 = vector.broadcast %c128_i32 : i32 to vector<1x128xi32>
    %76 = arith.cmpi slt, %2, %75 : vector<1x128xi32>
    %77 = arith.andi %74, %76 : vector<1x128xi1>
    %cst_19 = arith.constant 0.000000e+00 : f32
    %78 = vector.shape_cast %77 : vector<1x128xi1> to vector<1x128xi1>
    %79 = vector.broadcast %78 : vector<1x128xi1> to vector<4x128xi1>
    %80 = vector.broadcast %cst_19 : f32 to vector<4x128xf32>
    %81 = arith.select %79, %1, %80 : vector<4x128xi1>, vector<4x128xf32>
    %cst_20 = arith.constant dense<0.000000e+00> : vector<4xf32>
    %82 = vector.multi_reduction <add>, %81, %cst_20 [1] : vector<4x128xf32> to vector<4xf32>
    %83 = vector.shape_cast %82 : vector<4xf32> to vector<4x1xf32>
    %cst_21 = arith.constant 3.125000e-02 : f32
    %84 = vector.broadcast %cst_21 : f32 to vector<4x1xf32>
    %85 = arith.mulf %83, %84 : vector<4x1xf32>
    %cst_22 = arith.constant 9.99999974E-6 : f32
    %86 = vector.broadcast %cst_22 : f32 to vector<4x1xf32>
    %87 = arith.addf %85, %86 : vector<4x1xf32>
    %88 = math.rsqrt %87 : vector<4x1xf32>
    %cst_23 = arith.constant 0.000000e+00 : f32
    %89 = vector.shape_cast %77 : vector<1x128xi1> to vector<1x128xi1>
    %90 = vector.broadcast %89 : vector<1x128xi1> to vector<4x128xi1>
    %91 = vector.shape_cast %88 : vector<4x1xf32> to vector<4x1xf32>
    %92 = vector.broadcast %91 : vector<4x1xf32> to vector<4x128xf32>
    %93 = vector.broadcast %cst_23 : f32 to vector<4x128xf32>
    %94 = arith.select %90, %92, %93 : vector<4x128xi1>, vector<4x128xf32>
    %95 = arith.addf %72, %94 : vector<4x128xf32>
    %96 = arith.mulf %0, %95 : vector<4x128xf32>
    %c0_24 = arith.constant 0 : index
    %c0_25 = arith.constant 0 : index
    %97 = vector.load %arg2[%c0_24, %c0_25] : memref<1x128xf32, #tpu.memory_space<vmem>>, vector<1x128xf32>
    %98 = vector.broadcast %97 : vector<1x128xf32> to vector<4x128xf32>
    %99 = arith.mulf %96, %98 : vector<4x128xf32>
    %c0_26 = arith.constant 0 : index
    %c0_27 = arith.constant 0 : index
    %100 = vector.load %arg3[%c0_26, %c0_27] : memref<4x128xf32, #tpu.memory_space<vmem>>, vector<4x128xf32>
    tpu.vector_store %arg3[%c0_26, %c0_27], %99 {strides = array<i32>} : memref<4x128xf32, #tpu.memory_space<vmem>>, vector<4x128xf32>,
    return
  }
  func.func @transform_0(%arg0: i32) -> (i32, i32) {
    %c0_i32 = arith.constant 0 : i32
    %c0_i32_0 = arith.constant 0 : i32
    return %arg0, %c0_i32 : i32, i32
  }
  func.func @transform_1(%arg0: i32) -> (i32, i32) {
    %c0_i32 = arith.constant 0 : i32
    %c0_i32_0 = arith.constant 0 : i32
    %c0_i32_1 = arith.constant 0 : i32
    return %c0_i32, %c0_i32_0 : i32, i32
  }
  func.func @transform_2(%arg0: i32) -> (i32, i32) {
    %c0_i32 = arith.constant 0 : i32
    %c0_i32_0 = arith.constant 0 : i32
    return %arg0, %c0_i32 : i32, i32
  }
}

</mosaic_0001>

<llo_original>
// kernel: tpu_custom_call.1
$region0: #{tpu_custom_call.1}
  #allocation0 [shape = 'u32[]', space=smem, size = 0x4, offset = 0x4, fixed_abs, tag = 'smem constant byte address 0x4 - core index']
  #allocation1 [shape = 'u32[144,128]{1,0:T(1,128)}', space=vmem, size = 0x12000, scoped, tag = 'internal scratch']
  %s0 = inlined_call_operand.hbm [shape: f32[4,128], index: 0, kind: input, shape index: {}]
  %s1 = inlined_call_operand.vmem [shape: f32[1,128], index: 1, kind: input, shape index: {}]
  %s2 = inlined_call_operand.hbm [shape: f32[4,128], index: 2, kind: output, shape index: {}]
  %s3 = sld [smem:[#allocation0]]
  $region22: #{tpu_custom_call.1} parent=0
    _
  %s5 = ssub.s32 1, %s3
  %s6 = scalar_select 0, %s5, %s3
  $region1: #{tpu_custom_call.1} parent=0
    #allocation2 [shape = 'u8[2048]{0}', space=vmem, size = 0x800, scoped, tag = 'input window, operand 0, single buffered']
    #allocation3 [shape = 's32[1]{0}', space=sflag, size = 0x4, scoped, tag = 'scoped memory for tpu_custom_call.1']
    #allocation4 [shape = 's32[1]{0}', space=sflag, size = 0x4, scoped, tag = 'scoped memory for tpu_custom_call.1']
    #allocation5 [shape = 'u8[2048]{0}', space=vmem, size = 0x800, scoped, tag = 'output window, operand 0, single buffered']
    %7 = vsyncpa [#allocation3], 0
    %8 = vsyncpa [#allocation4], 0
    // Predicated region
    $region2: #{tpu_custom_call.1} parent=1 // pred_check
      _
    $region3: #{tpu_custom_call.1} parent=1 // pred_check_branch
      %10 = sbr.rel (0) target = $region5
    $region4: #{tpu_custom_call.1} parent=1 // pred_region
      %s12 = ssub.s32 64, 64
      %13 = vsyncadd [#allocation3], %s12
      %s15 = sshll.u32 [#allocation2], 4
      %s16 = int_to_ptr.vmem [resolvable:$true] %s15
      %18 = dma.hbm_to_vmem [thread:$0]  %s0, 64, %s16, [#allocation3]
    $region5: #{tpu_custom_call.1} parent=1 // pred_fallthru
      _
    // Predicated region
    $region6: #{tpu_custom_call.1} parent=1 // pred_check
      _
    $region7: #{tpu_custom_call.1} parent=1 // pred_check_branch
      %20 = sbr.rel (0) target = $region9
    $region8: #{tpu_custom_call.1} parent=1 // pred_region
      _
    $region9: #{tpu_custom_call.1} parent=1 // pred_fallthru
      _
    // Predicated region
    $region10: #{tpu_custom_call.1} parent=1 // pred_check
      _
    $region11: #{tpu_custom_call.1} parent=1 // pred_check_branch
      %22 = sbr.rel (0) target = $region13
    $region12: #{tpu_custom_call.1} parent=1 // pred_region
      %23 = dma.done [#allocation3], 64
    $region13: #{tpu_custom_call.1} parent=1 // pred_fallthru
      _
    %v24 = vld [vmem:[#allocation2] sm:$0xf]
    %v25 = vmul.f32 %v24, %v24
    %v26 = vlaneseq
    %v27 = vand.u32 %v26, 127
    %vm28 = vcmp.ge.s32.totalorder %v27, 0
    %vm29 = vcmp.lt.s32.totalorder %v27, 32
    %vm30 = vmand %vm28, %vm29
    %v31 = vsel %vm30, 1, 0
    %vm32 = vcmp.eq.s32.totalorder %v31, 1
    %v33 = vsel %vm32, %v25, 0.0
    %vm34 = vcmask 1043456
    %v35 = vsel %vm34, %v33, 0.0
    %36 = vadd.xlane.f32.xlu0 %v35
    %v37 = vpop.xlane.xlu0 %36
    %v38 = vmul.f32 %v37, 0.03125
    %v39 = vadd.f32 %v38, 1e-05
    %v40 = vrsqrt.pop %v39
    %v41 = vsel %vm32, %v40, 0.0
    %v42 = vadd.f32 %v41, 0.0
    %vm43 = vcmp.ge.s32.totalorder %v27, 32
    %vm44 = vcmp.lt.s32.totalorder %v27, 64
    %vm45 = vmand %vm43, %vm44
    %v46 = vsel %vm45, 1, 0
    %vm47 = vcmp.eq.s32.totalorder %v46, 1
    %v48 = vsel %vm47, %v25, 0.0
    %v49 = vsel %vm34, %v48, 0.0
    %50 = vadd.xlane.f32.xlu0 %v49
    %v51 = vpop.xlane.xlu0 %50
    %v52 = vmul.f32 %v51, 0.03125
    %v53 = vadd.f32 %v52, 1e-05
    %v54 = vrsqrt.pop %v53
    %v55 = vsel %vm47, %v54, 0.0
    %v56 = vadd.f32 %v42, %v55
    %vm57 = vcmp.ge.s32.totalorder %v27, 64
    %vm58 = vcmp.lt.s32.totalorder %v27, 96
    %vm59 = vmand %vm57, %vm58
    %v60 = vsel %vm59, 1, 0
    %vm61 = vcmp.eq.s32.totalorder %v60, 1
    %v62 = vsel %vm61, %v25, 0.0
    %v63 = vsel %vm34, %v62, 0.0
    %64 = vadd.xlane.f32.xlu0 %v63
    %v65 = vpop.xlane.xlu0 %64
    %v66 = vmul.f32 %v65, 0.03125
    %v67 = vadd.f32 %v66, 1e-05
    %v68 = vrsqrt.pop %v67
    %v69 = vsel %vm61, %v68, 0.0
    %v70 = vadd.f32 %v56, %v69
    %vm71 = vcmp.ge.s32.totalorder %v27, 96
    %vm72 = vcmp.lt.s32.totalorder %v27, 128
    %vm73 = vmand %vm71, %vm72
    %v74 = vsel %vm73, 1, 0
    %vm75 = vcmp.eq.s32.totalorder %v74, 1
    %v76 = vsel %vm75, %v25, 0.0
    %v77 = vsel %vm34, %v76, 0.0
    %78 = vadd.xlane.f32.xlu0 %v77
    %v79 = vpop.xlane.xlu0 %78
    %v80 = vmul.f32 %v79, 0.03125
    %v81 = vadd.f32 %v80, 1e-05
    %v82 = vrsqrt.pop %v81
    %v83 = vsel %vm75, %v82, 0.0
    %v84 = vadd.f32 %v70, %v83
    %v85 = vmul.f32 %v24, %v84
    %v86 = vld [vmem:[%s1] sm:$0x1]
    %v88 = vlaneseq
    %v89 = vshrl.u32 %v88, 7
    %v90 = vsub.s32 0, %v89
    %v91 = vrot.slane %v86, %v90
    %v93 = vmul.f32 %v85, %v91
    %94 = vst [vmem:[#allocation5] sm:$0xf] %v93
    // Predicated region
    $region14: #{tpu_custom_call.1} parent=1 // pred_check
      _
    $region15: #{tpu_custom_call.1} parent=1 // pred_check_branch
      %96 = sbr.rel (0) target = $region17
    $region16: #{tpu_custom_call.1} parent=1 // pred_region
      %s98 = ssub.s32 64, 64
      %99 = vsyncadd [#allocation4], %s98
      %s101 = sshll.u32 [#allocation5], 4
      %s102 = int_to_ptr.vmem [resolvable:$true] %s101
      %104 = dma.vmem_to_hbm [thread:$0]  %s102, 64, %s2, [#allocation4]
    $region17: #{tpu_custom_call.1} parent=1 // pred_fallthru
      _
    // Predicated region
    $region18: #{tpu_custom_call.1} parent=1 // pred_check
      _
    $region19: #{tpu_custom_call.1} parent=1 // pred_check_branch
      %106 = sbr.rel (0) target = $region21
    $region20: #{tpu_custom_call.1} parent=1 // pred_region
      %107 = dma.done [#allocation4], 64
    $region21: #{tpu_custom_call.1} parent=1 // pred_fallthru
      _
    %108 = vsyncpa [#allocation3], 1
    %109 = vsyncpa [#allocation4], 1

</llo_original>
